<compile_context>
chip_gen: v5e
topology: v5e:2x2
jax: 0.10.0
libtpu: 0.0.40
codegen_flags: <defaults>
</compile_context>

<pallas_src>
import jax
import jax.numpy as jnp
import numpy as np
from jax.experimental import pallas as pl
from jax.experimental.pallas import tpu as pltpu

# ----------------------------- configuration --------------------------------
HIDDEN = 32        # hidden_size
FFN = 64           # expert intermediate size
SEQ = 8            # num_tokens
BATCH = 2          # bz (first layer, so x is [bz, seq, hidden])
NUM_EXPERTS = 4
NUM_BEAMS = 2


# ------------- kernel 1: fused all-expert FFN + per-expert token-mean --------
def _fused_experts_kernel(x_ref, w1_ref, b1_ref, w2_ref, b2_ref, avg_ref,
                          cand_ref, mean_ref):
    # x_ref   : (B*S, H)          w1_ref : (H, E*F)        b1_ref : (1, E*F)
    # w2_ref  : (E*F, E*H) block-diagonal                  b2_ref : (1, E*H)
    # avg_ref : (B, B*S)  token-averaging matrix (1/S per row-group)
    # cand_ref: (B*S, E*H)        mean_ref: (B, E*H)
    x = x_ref[...]
    h = jnp.dot(x, w1_ref[...], preferred_element_type=jnp.float32) + b1_ref[...]
    # TODO(synk): PyTorch nn.GELU defaults to exact erf; tanh approximation used here.
    h = jax.nn.gelu(h, approximate=True)
    y = jnp.dot(h, w2_ref[...], preferred_element_type=jnp.float32) + b2_ref[...]
    cand_ref[...] = y                                                   # (B*S, E*H)
    mean_ref[...] = jnp.dot(avg_ref[...], y,
                            preferred_element_type=jnp.float32)         # (B, E*H)


def fused_experts(x2d, w1cat, b1cat, w2blk, b2cat, avg_mat):
    """Single invocation: everything fits in VMEM with large margin."""
    BS, _ = x2d.shape
    EH = w2blk.shape[1]
    B = avg_mat.shape[0]
    return pl.pallas_call(
        _fused_experts_kernel,
        out_shape=(jax.ShapeDtypeStruct((BS, EH), jnp.float32),
                   jax.ShapeDtypeStruct((B, EH), jnp.float32)),
    )(x2d, w1cat, b1cat, w2blk, b2cat, avg_mat)


# -------------- kernel 2: routed weighted gather / combine (single shot) -----
def _make_combine_call(B, BK, SH):
    def _combine_kernel(sel_ref, bsrc_ref, w_ref, cand_ref, out_ref):
        # sel_ref / bsrc_ref / w_ref : SMEM (BK,)
        # cand_ref: (E*B, 1, S*H)    out_ref: (BK, 1, S*H)   (256-lane-dense rows)
        for i in range(BK):                      # BK is tiny & static -> unrolled
            row = sel_ref[i] * B + bsrc_ref[i]   # data-dependent (expert, batch) row
            out_ref[i] = cand_ref[row] * w_ref[i]

    return pl.pallas_call(
        _combine_kernel,
        out_shape=jax.ShapeDtypeStruct((BK, 1, SH), jnp.float32),
        in_specs=[
            pl.BlockSpec(memory_space=pltpu.MemorySpace.SMEM),
            pl.BlockSpec(memory_space=pltpu.MemorySpace.SMEM),
            pl.BlockSpec(memory_space=pltpu.MemorySpace.SMEM),
            pl.BlockSpec(memory_space=pltpu.MemorySpace.VMEM),
        ],
        out_specs=pl.BlockSpec(memory_space=pltpu.MemorySpace.VMEM),
    )


def routed_combine(cand, sel, bsrc, weights):
    """final_output[i] = weights[i] * cand[sel[i], bsrc[i]]  ->  [BK, S, H]"""
    E, B, S, H = cand.shape
    BK = sel.shape[0]
    cand3 = cand.reshape(E * B, 1, S * H)        # lane-dense (…, 1, 256) layout
    out3 = _make_combine_call(B, BK, S * H)(sel, bsrc, weights, cand3)
    return out3.reshape(BK, S, H)


# ------------------------ full forward (post-route) --------------------------
def route_moe_forward(x, params, num_beams=NUM_BEAMS):
    """Reproduces RouteMoELayer.forward for route_method='post-route',
    layer_judge='first', weight_type='ffn_prob', use_log=True.
    attention_mask == ones -> x_masked == x (mask multiply is a no-op)."""
    B, S, H = x.shape
    E, _, F = params["w1"].shape

    # ---- pack weights into fused, lane-dense layouts (tiny, XLA-side) -------
    w1cat = jnp.transpose(params["w1"], (1, 0, 2)).reshape(H, E * F)    # (H, E*F)
    b1cat = params["b1"].reshape(1, E * F)
    w2blk = jnp.zeros((E * F, E * H), jnp.float32)
    for e in range(E):                                                  # block-diag W2
        w2blk = w2blk.at[e * F:(e + 1) * F, e * H:(e + 1) * H].set(params["w2"][e])
    b2cat = params["b2"].reshape(1, E * H)
    avg_mat = jnp.repeat(jnp.eye(B, dtype=jnp.float32), S, axis=1) / S  # (B, B*S)
    x2d = x.reshape(B * S, H)

    # TODO(synk): at production scale (H=768, F=3072) cast x/W to bf16 and add a
    # K/F-tiled grid (v7x 64 MiB VMEM); unnecessary at these toy shapes.
    cand2d, mean2d = fused_experts(x2d, w1cat, b1cat, w2blk, b2cat, avg_mat)

    # ---- gate: Linear(H, 1, bias=False) on per-expert token means -----------
    aver = mean2d.reshape(B, E, H)
    logits_gate = jnp.einsum("beh,h->be", aver, params["gate_w"][:, 0])
    current_scores = jax.nn.softmax(logits_gate, axis=-1)               # (B, E)
    current_scores_log = jnp.log(current_scores)

    # importance auxiliary loss (torch.std is unbiased -> ddof=1)
    importance = jnp.sum(current_scores, axis=0)
    importance_loss = (jnp.std(importance, ddof=1) / jnp.mean(importance)) ** 2

    # ---- beam search, first-layer branch (plain JAX top_k; no Pallas) -------
    topk_vals, topk_idx = jax.lax.top_k(jnp.exp(current_scores_log), num_beams)
    beam_scores = topk_vals.reshape(-1)                                 # [B*K]
    expert_route = topk_idx.reshape(-1)[:, None].astype(jnp.int32)      # [B*K, 1]
    beam_idx = jnp.arange(B * num_beams, dtype=jnp.int32)

    current_select_expert = expert_route[:, -1]                         # [B*K]
    scores_rep = jnp.repeat(current_scores, num_beams, axis=0)          # [B*K, E]
    bsrc = (beam_idx // num_beams).astype(jnp.int32)                    # source batch
    # weight_type == 'ffn_prob': weight = scores[beam_idx][i, selected_expert[i]]
    weights = jnp.take_along_axis(
        scores_rep[beam_idx], current_select_expert[:, None], axis=1)[:, 0]
    weights = weights.astype(jnp.float32)

    # ---- routed weighted combine (Pallas, lane-dense output) ----------------
    cand = cand2d.reshape(B, S, E, H).transpose(2, 0, 1, 3)             # (E, B, S, H)
    final_output = routed_combine(cand, current_select_expert, bsrc, weights)
    return final_output, beam_scores, expert_route, beam_idx, importance_loss


# --------------------------- pure-JAX reference ------------------------------
def reference(x, params, num_beams):
    E = params["w1"].shape[0]
    outs = []
    for e in range(E):
        h = jax.nn.gelu(x @ params["w1"][e] + params["b1"][e], approximate=True)
        outs.append(h @ params["w2"][e] + params["b2"][e])
    cand = jnp.stack(outs, axis=0)                              # [E, B, S, H]
    aver = cand.mean(axis=2)
    logits = jnp.concatenate([aver[e] @ params["gate_w"] for e in range(E)],
                             axis=1)                            # [B, E]
    scores = jax.nn.softmax(logits, axis=-1)
    log_scores = jnp.log(scores)
    imp = scores.sum(axis=0)
    loss = (jnp.std(imp, ddof=1) / jnp.mean(imp)) ** 2
    tv, ti = jax.lax.top_k(jnp.exp(log_scores), num_beams)
    beam_scores = tv.reshape(-1)
    route = ti.reshape(-1)[:, None]
    B = x.shape[0]
    BK = B * num_beams
    beam_idx = jnp.arange(BK)
    cand_rep = jnp.repeat(cand, num_beams, axis=1)              # [E, BK, S, H]
    scores_rep = jnp.repeat(scores, num_beams, axis=0)          # [BK, E]
    cand_perm = jnp.transpose(cand_rep, (1, 0, 2, 3))[beam_idx]
    onehot = jax.nn.one_hot(route[:, -1], E, dtype=scores.dtype)
    tmp = scores_rep[beam_idx] * onehot
    out = jnp.sum(cand_perm * tmp[:, :, None, None], axis=1)
    return out, beam_scores, route, beam_idx, loss


# --------------------------------- main --------------------------------------
if __name__ == "__main__":
    key = jax.random.PRNGKey(0)
    ks = jax.random.split(key, 6)
    x = jax.random.normal(ks[0], (BATCH, SEQ, HIDDEN), jnp.float32)
    params = {
        "w1": 0.05 * jax.random.normal(ks[1], (NUM_EXPERTS, HIDDEN, FFN), jnp.float32),
        "b1": 0.05 * jax.random.normal(ks[2], (NUM_EXPERTS, FFN), jnp.float32),
        "w2": 0.05 * jax.random.normal(ks[3], (NUM_EXPERTS, FFN, HIDDEN), jnp.float32),
        "b2": 0.05 * jax.random.normal(ks[4], (NUM_EXPERTS, HIDDEN), jnp.float32),
        "gate_w": 0.05 * jax.random.normal(ks[5], (HIDDEN, 1), jnp.float32),
    }

    fwd = jax.jit(route_moe_forward, static_argnames=("num_beams",))
    out = fwd(x, params, num_beams=NUM_BEAMS)
    out = jax.block_until_ready(out)

    ref = reference(x, params, NUM_BEAMS)
    np.testing.assert_allclose(np.asarray(out[0]), np.asarray(ref[0]),
                               rtol=1e-4, atol=1e-5)
    np.testing.assert_allclose(np.asarray(out[1]), np.asarray(ref[1]),
                               rtol=1e-4, atol=1e-5)
    np.testing.assert_allclose(np.asarray(out[4]), np.asarray(ref[4]),
                               rtol=1e-4, atol=1e-5)
    print("KERNEL_OK")
</pallas_src>

<mosaic_0001>
module attributes {stable_mosaic.version = 11 : i64} {
  func.func @_fused_experts_kernel(%arg0: memref<16x32xf32, #tpu.memory_space<vmem>>, %arg1: memref<32x256xf32, #tpu.memory_space<vmem>>, %arg2: memref<1x256xf32, #tpu.memory_space<vmem>>, %arg3: memref<256x128xf32, #tpu.memory_space<vmem>>, %arg4: memref<1x128xf32, #tpu.memory_space<vmem>>, %arg5: memref<2x16xf32, #tpu.memory_space<vmem>>, %arg6: memref<16x128xf32, #tpu.memory_space<vmem>>, %arg7: memref<2x128xf32, #tpu.memory_space<vmem>>) attributes {dimension_semantics = [], scalar_prefetch = 0 : i64, scratch_operands = 0 : i64, tpu.core_type = #tpu.core_type<tc>} {
    %c0 = arith.constant 0 : index
    %c0_0 = arith.constant 0 : index
    %0 = vector.load %arg0[%c0, %c0_0] : memref<16x32xf32, #tpu.memory_space<vmem>>, vector<16x32xf32>
    %c0_1 = arith.constant 0 : index
    %c0_2 = arith.constant 0 : index
    %1 = vector.load %arg1[%c0_1, %c0_2] : memref<32x256xf32, #tpu.memory_space<vmem>>, vector<32x256xf32>
    %cst = arith.constant dense<0.000000e+00> : vector<16x256xf32>
    %2 = tpu.matmul %0, %1, %cst {dimension_numbers = #tpu.dot_dimension_numbers<[1], [0], [0], [1], [0, 0, 1, 1], [], []>} : vector<16x32xf32>, vector<32x256xf32>, vector<16x256xf32> -> vector<16x256xf32>
    %c0_3 = arith.constant 0 : index
    %c0_4 = arith.constant 0 : index
    %3 = vector.load %arg2[%c0_3, %c0_4] : memref<1x256xf32, #tpu.memory_space<vmem>>, vector<1x256xf32>
    %4 = vector.broadcast %3 : vector<1x256xf32> to vector<16x256xf32>
    %5 = arith.addf %2, %4 : vector<16x256xf32>
    %6 = arith.mulf %5, %5 : vector<16x256xf32>
    %7 = arith.mulf %5, %6 : vector<16x256xf32>
    %cst_5 = arith.constant 4.471500e-02 : f32
    %8 = vector.broadcast %cst_5 : f32 to vector<16x256xf32>
    %9 = arith.mulf %8, %7 : vector<16x256xf32>
    %10 = arith.addf %5, %9 : vector<16x256xf32>
    %cst_6 = arith.constant 0.797884583 : f32
    %11 = vector.broadcast %cst_6 : f32 to vector<16x256xf32>
    %12 = arith.mulf %11, %10 : vector<16x256xf32>
    %13 = math.tanh %12 : vector<16x256xf32>
    %cst_7 = arith.constant 1.000000e+00 : f32
    %14 = vector.broadcast %cst_7 : f32 to vector<16x256xf32>
    %15 = arith.addf %14, %13 : vector<16x256xf32>
    %cst_8 = arith.constant 5.000000e-01 : f32
    %16 = vector.broadcast %cst_8 : f32 to vector<16x256xf32>
    %17 = arith.mulf %16, %15 : vector<16x256xf32>
    %18 = arith.mulf %5, %17 : vector<16x256xf32>
    %c0_9 = arith.constant 0 : index
    %c0_10 = arith.constant 0 : index
    %19 = vector.load %arg3[%c0_9, %c0_10] : memref<256x128xf32, #tpu.memory_space<vmem>>, vector<256x128xf32>
    %cst_11 = arith.constant dense<0.000000e+00> : vector<16x128xf32>
    %20 = tpu.matmul %18, %19, %cst_11 {dimension_numbers = #tpu.dot_dimension_numbers<[1], [0], [0], [1], [0, 0, 1, 1], [], []>} : vector<16x256xf32>, vector<256x128xf32>, vector<16x128xf32> -> vector<16x128xf32>
    %c0_12 = arith.constant 0 : index
    %c0_13 = arith.constant 0 : index
    %21 = vector.load %arg4[%c0_12, %c0_13] : memref<1x128xf32, #tpu.memory_space<vmem>>, vector<1x128xf32>
    %22 = vector.broadcast %21 : vector<1x128xf32> to vector<16x128xf32>
    %23 = arith.addf %20, %22 : vector<16x128xf32>
    %c0_14 = arith.constant 0 : index
    %c0_15 = arith.constant 0 : index
    %24 = vector.load %arg6[%c0_14, %c0_15] : memref<16x128xf32, #tpu.memory_space<vmem>>, vector<16x128xf32>
    tpu.vector_store %arg6[%c0_14, %c0_15], %23 {strides = array<i32>} : memref<16x128xf32, #tpu.memory_space<vmem>>, vector<16x128xf32>,
    %c0_16 = arith.constant 0 : index
    %c0_17 = arith.constant 0 : index
    %25 = vector.load %arg5[%c0_16, %c0_17] : memref<2x16xf32, #tpu.memory_space<vmem>>, vector<2x16xf32>
    %cst_18 = arith.constant dense<0.000000e+00> : vector<2x128xf32>
    %26 = tpu.matmul %25, %23, %cst_18 {dimension_numbers = #tpu.dot_dimension_numbers<[1], [0], [0], [1], [0, 0, 1, 1], [], []>} : vector<2x16xf32>, vector<16x128xf32>, vector<2x128xf32> -> vector<2x128xf32>
    %c0_19 = arith.constant 0 : index
    %c0_20 = arith.constant 0 : index
    %27 = vector.load %arg7[%c0_19, %c0_20] : memref<2x128xf32, #tpu.memory_space<vmem>>, vector<2x128xf32>
    tpu.vector_store %arg7[%c0_19, %c0_20], %26 {strides = array<i32>} : memref<2x128xf32, #tpu.memory_space<vmem>>, vector<2x128xf32>,
    return
  }
}

module attributes {stable_mosaic.version = 11 : i64} {
  func.func @_combine_kernel(%arg0: memref<4xi32, #tpu.memory_space<smem>>, %arg1: memref<4xi32, #tpu.memory_space<smem>>, %arg2: memref<4xf32, #tpu.memory_space<smem>>, %arg3: memref<8x1x256xf32, #tpu.memory_space<vmem>>, %arg4: memref<4x1x256xf32, #tpu.memory_space<vmem>>) attributes {dimension_semantics = [], scalar_prefetch = 0 : i64, scratch_operands = 0 : i64, tpu.core_type = #tpu.core_type<tc>} {
    %c0 = arith.constant 0 : index
    %0 = memref.load %arg0[%c0] : memref<4xi32, #tpu.memory_space<smem>>
    %c2_i32 = arith.constant 2 : i32
    %1 = arith.muli %0, %c2_i32 : i32
    %c0_0 = arith.constant 0 : index
    %2 = memref.load %arg1[%c0_0] : memref<4xi32, #tpu.memory_space<smem>>
    %3 = arith.addi %1, %2 : i32
    %4 = arith.index_cast %3 : i32 to index
    %c0_1 = arith.constant 0 : index
    %c0_2 = arith.constant 0 : index
    %5 = vector.load %arg3[%4, %c0_1, %c0_2] : memref<8x1x256xf32, #tpu.memory_space<vmem>>, vector<1x1x256xf32>
    %6 = vector.shape_cast %5 : vector<1x1x256xf32> to vector<1x256xf32>
    %c0_3 = arith.constant 0 : index
    %7 = memref.load %arg2[%c0_3] : memref<4xf32, #tpu.memory_space<smem>>
    %8 = vector.broadcast %7 : f32 to vector<1x256xf32>
    %9 = arith.mulf %6, %8 : vector<1x256xf32>
    %c0_4 = arith.constant 0 : index
    %c0_5 = arith.constant 0 : index
    %c0_6 = arith.constant 0 : index
    %10 = vector.load %arg4[%c0_4, %c0_5, %c0_6] : memref<4x1x256xf32, #tpu.memory_space<vmem>>, vector<1x1x256xf32>
    %11 = vector.shape_cast %10 : vector<1x1x256xf32> to vector<1x256xf32>
    %12 = vector.shape_cast %9 : vector<1x256xf32> to vector<1x1x256xf32>
    tpu.vector_store %arg4[%c0_4, %c0_5, %c0_6], %12 {strides = array<i32>} : memref<4x1x256xf32, #tpu.memory_space<vmem>>, vector<1x1x256xf32>,
    %c1 = arith.constant 1 : index
    %13 = memref.load %arg0[%c1] : memref<4xi32, #tpu.memory_space<smem>>
    %c2_i32_7 = arith.constant 2 : i32
    %14 = arith.muli %13, %c2_i32_7 : i32
    %c1_8 = arith.constant 1 : index
    %15 = memref.load %arg1[%c1_8] : memref<4xi32, #tpu.memory_space<smem>>
    %16 = arith.addi %14, %15 : i32
    %17 = arith.index_cast %16 : i32 to index
    %c0_9 = arith.constant 0 : index
    %c0_10 = arith.constant 0 : index
    %18 = vector.load %arg3[%17, %c0_9, %c0_10] : memref<8x1x256xf32, #tpu.memory_space<vmem>>, vector<1x1x256xf32>
    %19 = vector.shape_cast %18 : vector<1x1x256xf32> to vector<1x256xf32>
    %c1_11 = arith.constant 1 : index
    %20 = memref.load %arg2[%c1_11] : memref<4xf32, #tpu.memory_space<smem>>
    %21 = vector.broadcast %20 : f32 to vector<1x256xf32>
    %22 = arith.mulf %19, %21 : vector<1x256xf32>
    %c1_12 = arith.constant 1 : index
    %c0_13 = arith.constant 0 : index
    %c0_14 = arith.constant 0 : index
    %23 = vector.load %arg4[%c1_12, %c0_13, %c0_14] : memref<4x1x256xf32, #tpu.memory_space<vmem>>, vector<1x1x256xf32>
    %24 = vector.shape_cast %23 : vector<1x1x256xf32> to vector<1x256xf32>
    %25 = vector.shape_cast %22 : vector<1x256xf32> to vector<1x1x256xf32>
    tpu.vector_store %arg4[%c1_12, %c0_13, %c0_14], %25 {strides = array<i32>} : memref<4x1x256xf32, #tpu.memory_space<vmem>>, vector<1x1x256xf32>,
    %c2 = arith.constant 2 : index
    %26 = memref.load %arg0[%c2] : memref<4xi32, #tpu.memory_space<smem>>
    %c2_i32_15 = arith.constant 2 : i32
    %27 = arith.muli %26, %c2_i32_15 : i32
    %c2_16 = arith.constant 2 : index
    %28 = memref.load %arg1[%c2_16] : memref<4xi32, #tpu.memory_space<smem>>
    %29 = arith.addi %27, %28 : i32
    %30 = arith.index_cast %29 : i32 to index
    %c0_17 = arith.constant 0 : index
    %c0_18 = arith.constant 0 : index
    %31 = vector.load %arg3[%30, %c0_17, %c0_18] : memref<8x1x256xf32, #tpu.memory_space<vmem>>, vector<1x1x256xf32>
    %32 = vector.shape_cast %31 : vector<1x1x256xf32> to vector<1x256xf32>
    %c2_19 = arith.constant 2 : index
    %33 = memref.load %arg2[%c2_19] : memref<4xf32, #tpu.memory_space<smem>>
    %34 = vector.broadcast %33 : f32 to vector<1x256xf32>
    %35 = arith.mulf %32, %34 : vector<1x256xf32>
    %c2_20 = arith.constant 2 : index
    %c0_21 = arith.constant 0 : index
    %c0_22 = arith.constant 0 : index
    %36 = vector.load %arg4[%c2_20, %c0_21, %c0_22] : memref<4x1x256xf32, #tpu.memory_space<vmem>>, vector<1x1x256xf32>
    %37 = vector.shape_cast %36 : vector<1x1x256xf32> to vector<1x256xf32>
    %38 = vector.shape_cast %35 : vector<1x256xf32> to vector<1x1x256xf32>
    tpu.vector_store %arg4[%c2_20, %c0_21, %c0_22], %38 {strides = array<i32>} : memref<4x1x256xf32, #tpu.memory_space<vmem>>, vector<1x1x256xf32>,
    %c3 = arith.constant 3 : index
    %39 = memref.load %arg0[%c3] : memref<4xi32, #tpu.memory_space<smem>>
    %c2_i32_23 = arith.constant 2 : i32
    %40 = arith.muli %39, %c2_i32_23 : i32
    %c3_24 = arith.constant 3 : index
    %41 = memref.load %arg1[%c3_24] : memref<4xi32, #tpu.memory_space<smem>>
    %42 = arith.addi %40, %41 : i32
    %43 = arith.index_cast %42 : i32 to index
    %c0_25 = arith.constant 0 : index
    %c0_26 = arith.constant 0 : index
    %44 = vector.load %arg3[%43, %c0_25, %c0_26] : memref<8x1x256xf32, #tpu.memory_space<vmem>>, vector<1x1x256xf32>
    %45 = vector.shape_cast %44 : vector<1x1x256xf32> to vector<1x256xf32>
    %c3_27 = arith.constant 3 : index
    %46 = memref.load %arg2[%c3_27] : memref<4xf32, #tpu.memory_space<smem>>
    %47 = vector.broadcast %46 : f32 to vector<1x256xf32>
    %48 = arith.mulf %45, %47 : vector<1x256xf32>
    %c3_28 = arith.constant 3 : index
    %c0_29 = arith.constant 0 : index
    %c0_30 = arith.constant 0 : index
    %49 = vector.load %arg4[%c3_28, %c0_29, %c0_30] : memref<4x1x256xf32, #tpu.memory_space<vmem>>, vector<1x1x256xf32>
    %50 = vector.shape_cast %49 : vector<1x1x256xf32> to vector<1x256xf32>
    %51 = vector.shape_cast %48 : vector<1x256xf32> to vector<1x1x256xf32>
    tpu.vector_store %arg4[%c3_28, %c0_29, %c0_30], %51 {strides = array<i32>} : memref<4x1x256xf32, #tpu.memory_space<vmem>>, vector<1x1x256xf32>,
    return
  }
}

</mosaic_0001>

<llo_original>
// kernel: route_moe_forward.2
$region0: #{route_moe_forward.2}
  #allocation0 [shape = 'u32[]', space=smem, size = 0x4, offset = 0x4, fixed_abs, tag = 'smem constant byte address 0x4 - core index']
  #allocation1 [shape = 'u32[72,128]{1,0:T(1,128)}', space=vmem, size = 0x9000, scoped, tag = 'internal scratch']
  %s0 = inlined_call_operand.vmem [shape: f32[16,32], index: 0, kind: input, shape index: {}]
  %s1 = inlined_call_operand.vmem [shape: f32[32,256], index: 1, kind: input, shape index: {}]
  %s2 = inlined_call_operand.vmem [shape: f32[1,256], index: 2, kind: input, shape index: {}]
  %s3 = inlined_call_operand.vmem [shape: f32[256,128], index: 3, kind: input, shape index: {}]
  %s4 = inlined_call_operand.vmem [shape: f32[1,128], index: 4, kind: input, shape index: {}]
  %s5 = inlined_call_operand.vmem [shape: f32[2,16], index: 5, kind: input, shape index: {}]
  %s6 = inlined_call_operand.vmem [shape: f32[16,128], index: 6, kind: output, shape index: {0}]
  %s7 = inlined_call_operand.vmem [shape: f32[2,128], index: 7, kind: output, shape index: {1}]
  %8 = xla_tuple %s6, %s7
  %s9 = sld [smem:[#allocation0]]
  $region42: #{route_moe_forward.2} parent=0
    _
  %s11 = ssub.s32 1, %s9
  %s12 = scalar_select 0, %s11, %s9
  // Predicated region
  $region2: #{route_moe_forward.2} parent=0 // pred_check
    _
  $region3: #{route_moe_forward.2} parent=0 // pred_check_branch
    %14 = sbr.rel (0) target = $region5
  $region4: #{route_moe_forward.2} parent=0 // pred_region
    _
  $region5: #{route_moe_forward.2} parent=0 // pred_fallthru
    _
  // Predicated region
  $region6: #{route_moe_forward.2} parent=0 // pred_check
    _
  $region7: #{route_moe_forward.2} parent=0 // pred_check_branch
    %16 = sbr.rel (0) target = $region9
  $region8: #{route_moe_forward.2} parent=0 // pred_region
    _
  $region9: #{route_moe_forward.2} parent=0 // pred_fallthru
    _
  // Predicated region
  $region10: #{route_moe_forward.2} parent=0 // pred_check
    _
  $region11: #{route_moe_forward.2} parent=0 // pred_check_branch
    %18 = sbr.rel (0) target = $region13
  $region12: #{route_moe_forward.2} parent=0 // pred_region
    _
  $region13: #{route_moe_forward.2} parent=0 // pred_fallthru
    _
  // Predicated region
  $region14: #{route_moe_forward.2} parent=0 // pred_check
    _
  $region15: #{route_moe_forward.2} parent=0 // pred_check_branch
    %20 = sbr.rel (0) target = $region17
  $region16: #{route_moe_forward.2} parent=0 // pred_region
    _
  $region17: #{route_moe_forward.2} parent=0 // pred_fallthru
    _
  // Predicated region
  $region18: #{route_moe_forward.2} parent=0 // pred_check
    _
  $region19: #{route_moe_forward.2} parent=0 // pred_check_branch
    %22 = sbr.rel (0) target = $region21
  $region20: #{route_moe_forward.2} parent=0 // pred_region
    _
  $region21: #{route_moe_forward.2} parent=0 // pred_fallthru
    _
  // Predicated region
  $region22: #{route_moe_forward.2} parent=0 // pred_check
    _
  $region23: #{route_moe_forward.2} parent=0 // pred_check_branch
    %24 = sbr.rel (0) target = $region25
  $region24: #{route_moe_forward.2} parent=0 // pred_region
    _
  $region25: #{route_moe_forward.2} parent=0 // pred_fallthru
    _
  %v25 = vld [vmem:[%s0] sm:$0xff]
  %v26 = vld [vmem:[%s0 + $0x8] sm:$0xff]
  %v27 = vld [vmem:[%s1] sm:$0xff]
  %v28 = vld [vmem:[%s1 + $0x8] sm:$0xff]
  %v29 = vld [vmem:[%s1 + $0x10] sm:$0xff]
  %v30 = vld [vmem:[%s1 + $0x18] sm:$0xff]
  %v31 = vld [vmem:[%s1 + $0x20] sm:$0xff]
  %v32 = vld [vmem:[%s1 + $0x28] sm:$0xff]
  %v33 = vld [vmem:[%s1 + $0x30] sm:$0xff]
  %v34 = vld [vmem:[%s1 + $0x38] sm:$0xff]
  %v35 = vld [vmem:[%s2] sm:$0x3]
  %v37 = vperm.slane %v35, 0
  %v38 = vperm.slane %v35, 1
  %vm41 = vcmask 261120
  %v43 = vsel %vm41, %v25, 0
  %v46 = vsel %vm41, %v26, 0
  %48 = vmatpush.msra.mxu0 0.0
  %49 = vmatpush.msra.mxu0 0.0
  %50 = vmatpush.msra.mxu0 0.0
  %51 = vmatpush.msra.mxu0 0.0
  %52 = vmatpush.msra.mxu0 0.0
  %53 = vmatpush.msra.mxu0 0.0
  %54 = vmatpush.msra.mxu0 0.0
  %55 = vmatpush.msra.mxu0 0.0
  %56 = vmatpush.msra.mxu0 0.0
  %57 = vmatpush.msra.mxu0 0.0
  %58 = vmatpush.msra.mxu0 0.0
  %59 = vmatpush.msra.mxu0 0.0
  %60 = vmatpush.msra.mxu0 %v33
  %61 = vmatpush.msra.mxu0 %v31
  %62 = vmatpush.msra.mxu0 %v29
  %63 = vmatpush.msra.mxu0 %v27
  %64 = vmatmul.f32.gmra.mxu0 %v43
  %v65 = vpop.f32.mrf.mxu0
  %v66 = vadd.f32 %v37, %v65
  %67 = vmatmul.f32.gmra.mxu0 %v46
  %v68 = vpop.f32.mrf.mxu0
  %v69 = vadd.f32 %v37, %v68
  %70 = vdwg.mxu0
  %71 = vmatpush.msra.mxu0 0.0
  %72 = vmatpush.msra.mxu0 0.0
  %73 = vmatpush.msra.mxu0 0.0
  %74 = vmatpush.msra.mxu0 0.0
  %75 = vmatpush.msra.mxu0 0.0
  %76 = vmatpush.msra.mxu0 0.0
  %77 = vmatpush.msra.mxu0 0.0
  %78 = vmatpush.msra.mxu0 0.0
  %79 = vmatpush.msra.mxu0 0.0
  %80 = vmatpush.msra.mxu0 0.0
  %81 = vmatpush.msra.mxu0 0.0
  %82 = vmatpush.msra.mxu0 0.0
  %83 = vmatpush.msra.mxu0 %v34
  %84 = vmatpush.msra.mxu0 %v32
  %85 = vmatpush.msra.mxu0 %v30
  %86 = vmatpush.msra.mxu0 %v28
  %87 = vmatmul.f32.gmra.mxu0 %v43
  %v88 = vpop.f32.mrf.mxu0
  %v89 = vadd.f32 %v38, %v88
  %90 = vmatmul.f32.gmra.mxu0 %v46
  %v91 = vpop.f32.mrf.mxu0
  %v92 = vadd.f32 %v38, %v91
  %93 = vdwg.mxu0
  %v94 = vmul.f32 %v66, %v66
  %v95 = vmul.f32 %v89, %v89
  %v96 = vmul.f32 %v69, %v69
  %v97 = vmul.f32 %v92, %v92
  %v98 = vmul.f32 %v66, %v94
  %v99 = vmul.f32 %v89, %v95
  %v100 = vmul.f32 %v69, %v96
  %v101 = vmul.f32 %v92, %v97
  %v102 = vmul.f32 %v98, 0.044715
  %v103 = vmul.f32 %v99, 0.044715
  %v104 = vmul.f32 %v100, 0.044715
  %v105 = vmul.f32 %v101, 0.044715
  %v106 = vadd.f32 %v66, %v102
  %v107 = vadd.f32 %v89, %v103
  %v108 = vadd.f32 %v69, %v104
  %v109 = vadd.f32 %v92, %v105
  %v110 = vmul.f32 %v106, 0.7978846
  %v111 = vmul.f32 %v107, 0.7978846
  %v112 = vmul.f32 %v108, 0.7978846
  %v113 = vmul.f32 %v109, 0.7978846
  %v114 = vtanh.pop %v110
  %v115 = vtanh.pop %v111
  %v116 = vtanh.pop %v112
  %v117 = vtanh.pop %v113
  %v118 = vadd.f32 %v114, 1.0
  %v119 = vadd.f32 %v115, 1.0
  %v120 = vadd.f32 %v116, 1.0
  %v121 = vadd.f32 %v117, 1.0
  %v122 = vmul.f32 %v118, 0.5
  %v123 = vmul.f32 %v119, 0.5
  %v124 = vmul.f32 %v120, 0.5
  %v125 = vmul.f32 %v121, 0.5
  %v126 = vmul.f32 %v66, %v122
  %v127 = vmul.f32 %v89, %v123
  %v128 = vmul.f32 %v69, %v124
  %v129 = vmul.f32 %v92, %v125
  %v130 = vld [vmem:[%s3] sm:$0xff]
  %v131 = vld [vmem:[%s3 + $0x8] sm:$0xff]
  %v132 = vld [vmem:[%s3 + $0x10] sm:$0xff]
  %v133 = vld [vmem:[%s3 + $0x18] sm:$0xff]
  %v134 = vld [vmem:[%s3 + $0x20] sm:$0xff]
  %v135 = vld [vmem:[%s3 + $0x28] sm:$0xff]
  %v136 = vld [vmem:[%s3 + $0x30] sm:$0xff]
  %v137 = vld [vmem:[%s3 + $0x38] sm:$0xff]
  %v138 = vld [vmem:[%s3 + $0x40] sm:$0xff]
  %v139 = vld [vmem:[%s3 + $0x48] sm:$0xff]
  %v140 = vld [vmem:[%s3 + $0x50] sm:$0xff]
  %v141 = vld [vmem:[%s3 + $0x58] sm:$0xff]
  %v142 = vld [vmem:[%s3 + $0x60] sm:$0xff]
  %v143 = vld [vmem:[%s3 + $0x68] sm:$0xff]
  %v144 = vld [vmem:[%s3 + $0x70] sm:$0xff]
  %v145 = vld [vmem:[%s3 + $0x78] sm:$0xff]
  %v146 = vld [vmem:[%s3 + $0x80] sm:$0xff]
  %v147 = vld [vmem:[%s3 + $0x88] sm:$0xff]
  %v148 = vld [vmem:[%s3 + $0x90] sm:$0xff]
  %v149 = vld [vmem:[%s3 + $0x98] sm:$0xff]
  %v150 = vld [vmem:[%s3 + $0xa0] sm:$0xff]
  %v151 = vld [vmem:[%s3 + $0xa8] sm:$0xff]
  %v152 = vld [vmem:[%s3 + $0xb0] sm:$0xff]
  %v153 = vld [vmem:[%s3 + $0xb8] sm:$0xff]
  %v154 = vld [vmem:[%s3 + $0xc0] sm:$0xff]
  %v155 = vld [vmem:[%s3 + $0xc8] sm:$0xff]
  %v156 = vld [vmem:[%s3 + $0xd0] sm:$0xff]
  %v157 = vld [vmem:[%s3 + $0xd8] sm:$0xff]
  %v158 = vld [vmem:[%s3 + $0xe0] sm:$0xff]
  %v159 = vld [vmem:[%s3 + $0xe8] sm:$0xff]
  %v160 = vld [vmem:[%s3 + $0xf0] sm:$0xff]
  %v161 = vld [vmem:[%s3 + $0xf8] sm:$0xff]
  %v162 = vld [vmem:[%s4] sm:$0x1]
  %v164 = vperm.slane %v162, 0
  %166 = vmatpush.msra.mxu0 %v145
  %167 = vmatpush.msra.mxu0 %v144
  %168 = vmatpush.msra.mxu0 %v143
  %169 = vmatpush.msra.mxu0 %v142
  %170 = vmatpush.msra.mxu0 %v141
  %171 = vmatpush.msra.mxu0 %v140
  %172 = vmatpush.msra.mxu0 %v139
  %173 = vmatpush.msra.mxu0 %v138
  %174 = vmatpush.msra.mxu0 %v137
  %175 = vmatpush.msra.mxu0 %v136
  %176 = vmatpush.msra.mxu0 %v135
  %177 = vmatpush.msra.mxu0 %v134
  %178 = vmatpush.msra.mxu0 %v133
  %179 = vmatpush.msra.mxu0 %v132
  %180 = vmatpush.msra.mxu0 %v131
  %181 = vmatpush.msra.mxu0 %v130
  %182 = vmatmul.f32.gmra.mxu0 %v126
  %v183 = vpop.f32.mrf.mxu0
  %v184 = vadd.f32 %v164, %v183
  %185 = vmatmul.f32.gmra.mxu0 %v128
  %v186 = vpop.f32.mrf.mxu0
  %v187 = vadd.f32 %v164, %v186
  %188 = vdwg.mxu0
  %189 = vmatpush.msra.mxu0 %v161
  %190 = vmatpush.msra.mxu0 %v160
  %191 = vmatpush.msra.mxu0 %v159
  %192 = vmatpush.msra.mxu0 %v158
  %193 = vmatpush.msra.mxu0 %v157
  %194 = vmatpush.msra.mxu0 %v156
  %195 = vmatpush.msra.mxu0 %v155
  %196 = vmatpush.msra.mxu0 %v154
  %197 = vmatpush.msra.mxu0 %v153
  %198 = vmatpush.msra.mxu0 %v152
  %199 = vmatpush.msra.mxu0 %v151
  %200 = vmatpush.msra.mxu0 %v150
  %201 = vmatpush.msra.mxu0 %v149
  %202 = vmatpush.msra.mxu0 %v148
  %203 = vmatpush.msra.mxu0 %v147
  %204 = vmatpush.msra.mxu0 %v146
  %205 = vmatmul.f32.gmra.mxu0 %v127
  %v206 = vpop.f32.mrf.mxu0
  %v207 = vadd.f32 %v184, %v206
  %208 = vmatmul.f32.gmra.mxu0 %v129
  %v209 = vpop.f32.mrf.mxu0
  %v210 = vadd.f32 %v187, %v209
  %211 = vdwg.mxu0
  %212 = vst [vmem:[%s6] sm:$0xff] %v207
  %213 = vst [vmem:[%s6 + $0x8] sm:$0xff] %v210
  %v214 = vld [vmem:[%s5] sm:$0x3]
  %vm215 = vcmask 130048
  %v217 = vsel %vm215, %v214, 0
  %219 = vmatpush.msra.mxu0 0.0
  %220 = vmatpush.msra.mxu0 0.0
  %221 = vmatpush.msra.mxu0 0.0
  %222 = vmatpush.msra.mxu0 0.0
  %223 = vmatpush.msra.mxu0 0.0
  %224 = vmatpush.msra.mxu0 0.0
  %225 = vmatpush.msra.mxu0 0.0
  %226 = vmatpush.msra.mxu0 0.0
  %227 = vmatpush.msra.mxu0 0.0
  %228 = vmatpush.msra.mxu0 0.0
  %229 = vmatpush.msra.mxu0 0.0
  %230 = vmatpush.msra.mxu0 0.0
  %231 = vmatpush.msra.mxu0 0.0
  %232 = vmatpush.msra.mxu0 0.0
  %233 = vmatpush.msra.mxu0 %v210
  %234 = vmatpush.msra.mxu0 %v207
  %235 = vmatmul.f32.gmra.mxu0 %v217
  %v236 = vpop.f32.mrf.mxu0
  %v237 = vadd.f32 0.0, %v236
  %238 = vdwg.mxu0
  %239 = vst [vmem:[%s7] sm:$0x3] %v237
  // Predicated region
  $region26: #{route_moe_forward.2} parent=0 // pred_check
    _
  $region27: #{route_moe_forward.2} parent=0 // pred_check_branch
    %241 = sbr.rel (0) target = $region29
  $region28: #{route_moe_forward.2} parent=0 // pred_region
    _
  $region29: #{route_moe_forward.2} parent=0 // pred_fallthru
    _
  // Predicated region
  $region30: #{route_moe_forward.2} parent=0 // pred_check
    _
  $region31: #{route_moe_forward.2} parent=0 // pred_check_branch
    %243 = sbr.rel (0) target = $region33
  $region32: #{route_moe_forward.2} parent=0 // pred_region
    _
  $region33: #{route_moe_forward.2} parent=0 // pred_fallthru
    _
  // Predicated region
  $region34: #{route_moe_forward.2} parent=0 // pred_check
    _
  $region35: #{route_moe_forward.2} parent=0 // pred_check_branch
    %245 = sbr.rel (0) target = $region37
  $region36: #{route_moe_forward.2} parent=0 // pred_region
    _
  $region37: #{route_moe_forward.2} parent=0 // pred_fallthru
    _
  // Predicated region
  $region38: #{route_moe_forward.2} parent=0 // pred_check
    _
  $region39: #{route_moe_forward.2} parent=0 // pred_check_branch
    %247 = sbr.rel (0) target = $region41
  $region40: #{route_moe_forward.2} parent=0 // pred_region
    _
  $region41: #{route_moe_forward.2} parent=0 // pred_fallthru
    _

// kernel: route_moe_forward.3
$region0: #{route_moe_forward.3}
  #allocation0 [shape = 'u32[]', space=smem, size = 0x4, offset = 0x4, fixed_abs, tag = 'smem constant byte address 0x4 - core index']
  #allocation1 [shape = 'u32[72,128]{1,0:T(1,128)}', space=vmem, size = 0x9000, scoped, tag = 'internal scratch']
  %s0 = inlined_call_operand.vmem [shape: s32[4], index: 0, kind: input, shape index: {}]
  %s1 = inlined_call_operand.vmem [shape: s32[4], index: 1, kind: input, shape index: {}]
  %s2 = inlined_call_operand.vmem [shape: f32[4], index: 2, kind: input, shape index: {}]
  %s3 = inlined_call_operand.vmem [shape: f32[8,1,256], index: 3, kind: input, shape index: {}]
  %s4 = inlined_call_operand.vmem [shape: f32[4,1,256], index: 4, kind: output, shape index: {}]
  %s5 = sld [smem:[#allocation0]]
  $region38: #{route_moe_forward.3} parent=0
    _
  %s7 = ssub.s32 1, %s5
  %s8 = scalar_select 0, %s7, %s5
  $region1: #{route_moe_forward.3} parent=0
    #allocation2 [shape = 'u8[512]{0}', space=smem, size = 0x200, scoped, tag = 'input window, operand 0, single buffered']
    #allocation3 [shape = 's32[1]{0}', space=sflag, size = 0x4, scoped, tag = 'scoped memory for route_moe_forward.3']
    #allocation4 [shape = 'u8[512]{0}', space=smem, size = 0x200, scoped, tag = 'input window, operand 1, single buffered']
    #allocation5 [shape = 's32[1]{0}', space=sflag, size = 0x4, scoped, tag = 'scoped memory for route_moe_forward.3']
    #allocation6 [shape = 'u8[512]{0}', space=smem, size = 0x200, scoped, tag = 'input window, operand 2, single buffered']
    %9 = vsyncpa [#allocation3], 0
    %10 = vsyncpa [#allocation5], 0
    // Predicated region
    $region2: #{route_moe_forward.3} parent=1 // pred_check
      _
    $region3: #{route_moe_forward.3} parent=1 // pred_check_branch
      %12 = sbr.rel (0) target = $region5
    $region4: #{route_moe_forward.3} parent=1 // pred_region
      %14 = vsyncadd [#allocation3], 0
      %s16 = sshll.u32 %s0, 4
      %s17 = int_to_ptr.vmem [resolvable:$true] %s16
      %19 = dma.vmem_to_smem %s17, 16, [#allocation2], [#allocation3]
    $region5: #{route_moe_forward.3} parent=1 // pred_fallthru
      _
    // Predicated region
    $region6: #{route_moe_forward.3} parent=1 // pred_check
      _
    $region7: #{route_moe_forward.3} parent=1 // pred_check_branch
      %21 = sbr.rel (0) target = $region9
    $region8: #{route_moe_forward.3} parent=1 // pred_region
      %23 = vsyncadd [#allocation5], 0
      %s25 = sshll.u32 %s1, 4
      %s26 = int_to_ptr.vmem [resolvable:$true] %s25
      %28 = dma.vmem_to_smem %s26, 16, [#allocation4], [#allocation5]
    $region9: #{route_moe_forward.3} parent=1 // pred_fallthru
      _
    // Predicated region
    $region10: #{route_moe_forward.3} parent=1 // pred_check
      _
    $region11: #{route_moe_forward.3} parent=1 // pred_check_branch
      %30 = sbr.rel (0) target = $region13
    $region12: #{route_moe_forward.3} parent=1 // pred_region
      %32 = vsyncadd [#allocation5], 0
      %s34 = sshll.u32 %s2, 4
      %s35 = int_to_ptr.vmem [resolvable:$true] %s34
      %37 = dma.vmem_to_smem %s35, 16, [#allocation6], [#allocation5]
    $region13: #{route_moe_forward.3} parent=1 // pred_fallthru
      _
    // Predicated region
    $region14: #{route_moe_forward.3} parent=1 // pred_check
      _
    $region15: #{route_moe_forward.3} parent=1 // pred_check_branch
      %39 = sbr.rel (0) target = $region17
    $region16: #{route_moe_forward.3} parent=1 // pred_region
      _
    $region17: #{route_moe_forward.3} parent=1 // pred_fallthru
      _
    // Predicated region
    $region18: #{route_moe_forward.3} parent=1 // pred_check
      _
    $region19: #{route_moe_forward.3} parent=1 // pred_check_branch
      %41 = sbr.rel (0) target = $region21
    $region20: #{route_moe_forward.3} parent=1 // pred_region
      %43 = dma.done [#allocation3], 16
    $region21: #{route_moe_forward.3} parent=1 // pred_fallthru
      _
    // Predicated region
    $region22: #{route_moe_forward.3} parent=1 // pred_check
      _
    $region23: #{route_moe_forward.3} parent=1 // pred_check_branch
      %45 = sbr.rel (0) target = $region25
    $region24: #{route_moe_forward.3} parent=1 // pred_region
      %47 = dma.done [#allocation5], 16
    $region25: #{route_moe_forward.3} parent=1 // pred_fallthru
      _
    // Predicated region
    $region26: #{route_moe_forward.3} parent=1 // pred_check
      _
    $region27: #{route_moe_forward.3} parent=1 // pred_check_branch
      %49 = sbr.rel (0) target = $region29
    $region28: #{route_moe_forward.3} parent=1 // pred_region
      %51 = dma.done [#allocation5], 16
    $region29: #{route_moe_forward.3} parent=1 // pred_fallthru
      _
    %52 = sfence
    %s53 = sld [smem:[#allocation2]]
    %s54 = smul.u32 %s53, 2
    %s55 = sld [smem:[#allocation4]]
    %s56 = sadd.s32 %s54, %s55
    %s57 = smul.u32 %s56, 2
    %s58 = scalar_lea.vmem %s3, %s57
    %v59 = vld [vmem:[%s58] sm:$0x3]
    %s60 = sld [smem:[#allocation6]]
    %v61 = vstv %s60
    %v62 = vmul.f32 %v59, %v61
    %v63 = vlaneseq
    %vm64 = vcmp.ge.s32.totalorder %v63, 0
    %vm65 = vcmp.lt.s32.totalorder %v63, 256
    %vm66 = vmand %vm64, %vm65
    %67 = vst.msk [vmem:[%s4] sm:$0x3] %vm66, %v62
    %s68 = sld [smem:[#allocation2 + $0x1]]
    %s69 = smul.u32 %s68, 2
    %s70 = sld [smem:[#allocation4 + $0x1]]
    %s71 = sadd.s32 %s69, %s70
    %s72 = smul.u32 %s71, 2
    %s73 = scalar_lea.vmem %s3, %s72
    %v74 = vld [vmem:[%s73] sm:$0x3]
    %s75 = sld [smem:[#allocation6 + $0x1]]
    %v76 = vstv %s75
    %v77 = vmul.f32 %v74, %v76
    %s78 = scalar_lea.vmem %s4, 2
    %79 = vst.msk [vmem:[%s78] sm:$0x3] %vm66, %v77
    %s80 = sld [smem:[#allocation2 + $0x2]]
    %s81 = smul.u32 %s80, 2
    %s82 = sld [smem:[#allocation4 + $0x2]]
    %s83 = sadd.s32 %s81, %s82
    %s84 = smul.u32 %s83, 2
    %s85 = scalar_lea.vmem %s3, %s84
    %v86 = vld [vmem:[%s85] sm:$0x3]
    %s87 = sld [smem:[#allocation6 + $0x2]]
    %v88 = vstv %s87
    %v89 = vmul.f32 %v86, %v88
    %s90 = scalar_lea.vmem %s4, 4
    %91 = vst.msk [vmem:[%s90] sm:$0x3] %vm66, %v89
    %s92 = sld [smem:[#allocation2 + $0x3]]
    %s93 = smul.u32 %s92, 2
    %s94 = sld [smem:[#allocation4 + $0x3]]
    %s95 = sadd.s32 %s93, %s94
    %s96 = smul.u32 %s95, 2
    %s97 = scalar_lea.vmem %s3, %s96
    %v98 = vld [vmem:[%s97] sm:$0x3]
    %s99 = sld [smem:[#allocation6 + $0x3]]
    %v100 = vstv %s99
    %v101 = vmul.f32 %v98, %v100
    %s102 = scalar_lea.vmem %s4, 6
    %103 = vst.msk [vmem:[%s102] sm:$0x3] %vm66, %v101
    // Predicated region
    $region30: #{route_moe_forward.3} parent=1 // pred_check
      _
    $region31: #{route_moe_forward.3} parent=1 // pred_check_branch
      %105 = sbr.rel (0) target = $region33
    $region32: #{route_moe_forward.3} parent=1 // pred_region
      _
    $region33: #{route_moe_forward.3} parent=1 // pred_fallthru
      _
    // Predicated region
    $region34: #{route_moe_forward.3} parent=1 // pred_check
      _
    $region35: #{route_moe_forward.3} parent=1 // pred_check_branch
      %107 = sbr.rel (0) target = $region37
    $region36: #{route_moe_forward.3} parent=1 // pred_region
      _
    $region37: #{route_moe_forward.3} parent=1 // pred_fallthru
      _
    %108 = vsyncpa [#allocation3], 1
    %109 = vsyncpa [#allocation5], 1

</llo_original>
